<compile_context>
chip_gen: v5e
topology: v5e:2x2
jax: 0.10.0
libtpu: 0.0.40
codegen_flags: <defaults>
</compile_context>

<pallas_src>
import functools

import jax
import jax.numpy as jnp
from jax import lax
from jax.experimental import pallas as pl
from jax.experimental.pallas import tpu as pltpu


def _pick_tile(dim, preferred, align):
    """Largest multiple of `align` that divides `dim` and is <= `preferred`.

    Falls back to the full dimension (always a legal block extent) when the
    dimension is small or has no aligned divisor.
    """
    if dim <= preferred:
        return dim
    t = (preferred // align) * align
    while t >= align:
        if dim % t == 0:
            return t
        t -= align
    return dim


def _barlow_twins_kernel(mu_a_ref, row_scale_ref, sb_ref, col_scale_ref,
                         za_ref, zb_ref, out_ref, acc_ref, *, lamda, scale):
    i = pl.program_id(0)
    j = pl.program_id(1)
    k = pl.program_id(2)
    nk = pl.num_programs(2)

    # ---- init the gram accumulator at the start of each (i, j) reduction ----
    @pl.when(k == 0)
    def _init():
        acc_ref[...] = jnp.zeros_like(acc_ref)

    # MXU: raw gram accumulation Z_a^T Z_b in f32.  Contracting dim 0 of the
    # LHS is the native transposed-LHS MXU path (no XLU transpose of the tile).
    acc_ref[...] += lax.dot_general(
        za_ref[...], zb_ref[...],
        dimension_numbers=(((0,), (0,)), ((), ())),
        preferred_element_type=jnp.float32)

    # ---- finalize: rank-1 normalization of the tile + loss reduction ----
    @pl.when(k == nk - 1)
    def _finalize():
        lam = jnp.float32(lamda)
        sc = jnp.float32(scale)

        mu_a = mu_a_ref[...]          # [1, tile_d]  mean(Z_a) slice for rows i
        rs = row_scale_ref[...]       # [1, tile_d]  inv_std_a / N
        sb = sb_ref[...]              # [1, tile_d]  sum(Z_b) slice for cols j
        cs = col_scale_ref[...]       # [1, tile_d]  inv_std_b

        g = acc_ref[...]              # [tile_d, tile_d] f32
        c = (g - mu_a.T * sb) * rs.T * cs

        tile_loss = lam * jnp.sum(c * c)   # lamda applied at scalar level

        def _with_diag():
            # Diagonal correction per element t of a diagonal tile:
            #   (c_tt - 1)^2 - lamda*c_tt^2 = (1-lamda)*c_tt^2 - 2*c_tt + 1
            rows = lax.broadcasted_iota(jnp.int32, c.shape, 0)
            cols = lax.broadcasted_iota(jnp.int32, c.shape, 1)
            corr = jnp.where(rows == cols,
                             (1.0 - lam) * c * c - 2.0 * c + 1.0,
                             jnp.float32(0.0))
            return tile_loss + jnp.sum(corr)

        total = sc * lax.cond(i == j, _with_diag, lambda: tile_loss)

        # Single lane-dense (8, 128) store; only element [0, 0] is non-zero.
        ri = lax.broadcasted_iota(jnp.int32, out_ref.shape, 0)
        ci = lax.broadcasted_iota(jnp.int32, out_ref.shape, 1)
        out_ref[...] = jnp.where((ri == 0) & (ci == 0), total, 0.0)


def _feature_stats(z, eps):
    """Two-pass (mean, inv_std) in f32 over axis 0 (biased variance, like BN)."""
    z32 = z.astype(jnp.float32)
    mu = jnp.mean(z32, axis=0, keepdims=True)                         # [1, D]
    var = jnp.mean(jnp.square(z32 - mu), axis=0, keepdims=True)       # [1, D]
    inv_std = lax.rsqrt(var + jnp.float32(eps))
    return mu, inv_std


def barlow_twins_loss(z_a, z_b, *, lamda=0.05, scale=0.025, eps=1e-5,
                      tile_d=None, tile_n=None,
                      compute_dtype=jnp.bfloat16):
    """Pallas implementation of sslsv BarlowTwins.forward((Z_a, Z_b)).

    compute_dtype: dtype the raw tiles are fed to the MXU in (default bf16 —
    halves HBM traffic, full-rate MXU; f32 accumulation).  Pass None to keep
    the input dtype bit-exact.
    """
    assert z_a.shape == z_b.shape and z_a.ndim == 2
    n, d = z_a.shape

    # Cast once in the wrapper; statistics are computed on the *cast* data so
    # the rank-1 normalization identity holds exactly for what the MXU sees.
    if compute_dtype is not None and z_a.dtype != jnp.dtype(compute_dtype):
        za_c = z_a.astype(compute_dtype)
        zb_c = z_b.astype(compute_dtype)
    else:
        za_c, zb_c = z_a, z_b

    if tile_d is None:
        # tile_d is the HBM data-reuse knob (each input is re-read D/tile_d
        # times).  1024 for big D (bf16 AI ~512 FLOP/B, near the v6e roofline);
        # 512 for moderate D keeps >= 4x4 output tiles for v7x megacore balance.
        tile_d = _pick_tile(d, 1024 if d >= 4096 else 512, 128)
    if tile_n is None:
        tile_n = _pick_tile(n, 1024, 8)
    assert d % tile_d == 0 and n % tile_n == 0

    ni = d // tile_d
    nj = d // tile_d
    nk = n // tile_n

    # Hoisted per-feature statistics (perf review): tiny [1, D] f32 inputs.
    mu_a, inv_std_a = _feature_stats(za_c, eps)
    mu_b, inv_std_b = _feature_stats(zb_c, eps)
    row_scale = inv_std_a * jnp.float32(1.0 / n)   # folds the 1/N of c = G/N
    col_scale = inv_std_b
    sb = mu_b * jnp.float32(n)                     # = sum(Z_b, axis=0)

    # Explicit VMEM budget: f32 acc + finalize temporaries + double-buffered
    # input tiles + stat vectors + output block.  Cap at 64 MiB (v7x physical).
    in_itemsize = jnp.dtype(za_c.dtype).itemsize
    vmem_est = (3 * tile_d * tile_d * 4
                + 2 * 2 * tile_n * tile_d * in_itemsize
                + 4 * 2 * tile_d * 4
                + 2 * 8 * 128 * 4)
    vmem_limit = min(64 * 1024 * 1024,
                     max(32 * 1024 * 1024, int(vmem_est * 1.5)))

    kernel = functools.partial(_barlow_twins_kernel, lamda=lamda, scale=scale)

    partials = pl.pallas_call(
        kernel,
        # One lane-dense (8, 128) partial-loss block per (i, j) output tile.
        out_shape=jax.ShapeDtypeStruct((ni * 8, nj * 128), jnp.float32),
        grid_spec=pltpu.PrefetchScalarGridSpec(
            num_scalar_prefetch=0,
            grid=(ni, nj, nk),
            in_specs=[
                pl.BlockSpec((1, tile_d), lambda i, j, k: (0, i)),   # mu_a
                pl.BlockSpec((1, tile_d), lambda i, j, k: (0, i)),   # row_scale
                pl.BlockSpec((1, tile_d), lambda i, j, k: (0, j)),   # sum(Z_b)
                pl.BlockSpec((1, tile_d), lambda i, j, k: (0, j)),   # col_scale
                pl.BlockSpec((tile_n, tile_d), lambda i, j, k: (k, i)),  # Z_a
                pl.BlockSpec((tile_n, tile_d), lambda i, j, k: (k, j)),  # Z_b
            ],
            out_specs=pl.BlockSpec((8, 128), lambda i, j, k: (i, j)),
            scratch_shapes=[
                pltpu.VMEM((tile_d, tile_d), jnp.float32),   # gram accumulator
            ],
        ),
        compiler_params=pltpu.CompilerParams(
            dimension_semantics=("parallel", "parallel", "arbitrary"),
            vmem_limit_bytes=vmem_limit),
    )(mu_a, row_scale, sb, col_scale, za_c, zb_c)

    # Tiny reduction over the per-tile partials (all-zero except [0,0] of each
    # (8,128) block).
    return jnp.sum(partials)


if __name__ == "__main__":
    key = jax.random.PRNGKey(0)

    def reference(z_a, z_b, lamda=0.05, scale=0.025, eps=1e-5):
        def bn(z):
            mu = jnp.mean(z, axis=0, keepdims=True)
            var = jnp.mean((z - mu) ** 2, axis=0, keepdims=True)
            return (z - mu) / jnp.sqrt(var + eps)
        n, d = z_a.shape
        za = bn(z_a.astype(jnp.float32))
        zb = bn(z_b.astype(jnp.float32))
        c = za.T @ zb / n
        eye = jnp.eye(d, dtype=jnp.float32)
        sq = (c - eye) ** 2
        return jnp.sum(jnp.where(eye > 0, sq, sq * lamda)) * scale

    # Case 1: tiny single-tile problem (N=8, D=32), exact f32 compute path.
    ka, kb = jax.random.split(key)
    z_a = jax.random.normal(ka, (8, 32), dtype=jnp.float32)
    z_b = jax.random.normal(kb, (8, 32), dtype=jnp.float32)
    loss = barlow_twins_loss(z_a, z_b, compute_dtype=None)
    jax.block_until_ready(loss)
    ref = reference(z_a, z_b)
    if not jnp.allclose(loss, ref, rtol=2e-3, atol=1e-4):
        raise AssertionError(f"case1 mismatch: kernel={loss} ref={ref}")

    # Case 2: exercises the full 3-D grid (2x2 output tiles, 2 k-steps,
    # diagonal + off-diagonal tiles) with small explicit tiles and the default
    # bf16 compute path.
    kc, kd = jax.random.split(ka)
    z_a2 = jax.random.normal(kc, (32, 256), dtype=jnp.float32)
    z_b2 = jax.random.normal(kd, (32, 256), dtype=jnp.float32)
    loss2 = barlow_twins_loss(z_a2, z_b2, tile_d=128, tile_n=16)
    jax.block_until_ready(loss2)
    ref2 = reference(z_a2, z_b2)
    if not jnp.allclose(loss2, ref2, rtol=1e-2, atol=1e-3):
        raise AssertionError(f"case2 mismatch: kernel={loss2} ref={ref2}")

    print("KERNEL_OK")
</pallas_src>

<mosaic_0001>
module attributes {stable_mosaic.version = 11 : i64} {
  func.func @_barlow_twins_kernel(%arg0: i32, %arg1: i32, %arg2: i32, %arg3: memref<1x32xf32, #tpu.memory_space<vmem>>, %arg4: memref<1x32xf32, #tpu.memory_space<vmem>>, %arg5: memref<1x32xf32, #tpu.memory_space<vmem>>, %arg6: memref<1x32xf32, #tpu.memory_space<vmem>>, %arg7: memref<8x32xf32, #tpu.memory_space<vmem>>, %arg8: memref<8x32xf32, #tpu.memory_space<vmem>>, %arg9: memref<8x128xf32, #tpu.memory_space<vmem>>, %arg10: memref<32x32xf32, #tpu.memory_space<vmem>>) attributes {dimension_semantics = [#tpu.dimension_semantics<parallel>, #tpu.dimension_semantics<parallel>, #tpu.dimension_semantics<arbitrary>], iteration_bounds = array<i64: 1, 1, 1>, scalar_prefetch = 0 : i64, scratch_operands = 1 : i64, tpu.core_type = #tpu.core_type<tc>, window_params = [{transform_indices = @transform_0, window_bounds = array<i64: 1, 32>}, {transform_indices = @transform_1, window_bounds = array<i64: 1, 32>}, {transform_indices = @transform_2, window_bounds = array<i64: 1, 32>}, {transform_indices = @transform_3, window_bounds = array<i64: 1, 32>}, {transform_indices = @transform_4, window_bounds = array<i64: 8, 32>}, {transform_indices = @transform_5, window_bounds = array<i64: 8, 32>}, {transform_indices = @transform_6, window_bounds = array<i64: 8, 128>}]} {
    %c0_i32 = arith.constant 0 : i32
    %0 = arith.cmpi eq, %arg2, %c0_i32 : i32
    %1 = arith.extui %0 : i1 to i32
    %c0_i32_0 = arith.constant 0 : i32
    %2 = arith.cmpi ne, %1, %c0_i32_0 : i32
    scf.if %2 {
      %cst_10 = arith.constant 0.000000e+00 : f32
      %12 = vector.broadcast %cst_10 : f32 to vector<32x32xf32>
      %c0_11 = arith.constant 0 : index
      %c0_12 = arith.constant 0 : index
      %13 = vector.load %arg10[%c0_11, %c0_12] : memref<32x32xf32, #tpu.memory_space<vmem>>, vector<32x32xf32>
      tpu.vector_store %arg10[%c0_11, %c0_12], %12 {strides = array<i32>} : memref<32x32xf32, #tpu.memory_space<vmem>>, vector<32x32xf32>,
    } else {
    }
    %c0 = arith.constant 0 : index
    %c0_1 = arith.constant 0 : index
    %3 = vector.load %arg10[%c0, %c0_1] : memref<32x32xf32, #tpu.memory_space<vmem>>, vector<32x32xf32>
    %c0_2 = arith.constant 0 : index
    %c0_3 = arith.constant 0 : index
    %4 = vector.load %arg7[%c0_2, %c0_3] : memref<8x32xf32, #tpu.memory_space<vmem>>, vector<8x32xf32>
    %c0_4 = arith.constant 0 : index
    %c0_5 = arith.constant 0 : index
    %5 = vector.load %arg8[%c0_4, %c0_5] : memref<8x32xf32, #tpu.memory_space<vmem>>, vector<8x32xf32>
    %cst = arith.constant dense<0.000000e+00> : vector<32x32xf32>
    %6 = tpu.matmul %4, %5, %cst {dimension_numbers = #tpu.dot_dimension_numbers<[0], [0], [1], [1], [0, 1, 1, 1], [], []>} : vector<8x32xf32>, vector<8x32xf32>, vector<32x32xf32> -> vector<32x32xf32>
    %7 = arith.addf %3, %6 : vector<32x32xf32>
    %c0_6 = arith.constant 0 : index
    %c0_7 = arith.constant 0 : index
    %8 = vector.load %arg10[%c0_6, %c0_7] : memref<32x32xf32, #tpu.memory_space<vmem>>, vector<32x32xf32>
    tpu.vector_store %arg10[%c0_6, %c0_7], %7 {strides = array<i32>} : memref<32x32xf32, #tpu.memory_space<vmem>>, vector<32x32xf32>,
    %c0_i32_8 = arith.constant 0 : i32
    %9 = arith.cmpi eq, %arg2, %c0_i32_8 : i32
    %10 = arith.extui %9 : i1 to i32
    %c0_i32_9 = arith.constant 0 : i32
    %11 = arith.cmpi ne, %10, %c0_i32_9 : i32
    scf.if %11 {
      %c0_10 = arith.constant 0 : index
      %c0_11 = arith.constant 0 : index
      %12 = vector.load %arg3[%c0_10, %c0_11] : memref<1x32xf32, #tpu.memory_space<vmem>>, vector<1x32xf32>
      %c0_12 = arith.constant 0 : index
      %c0_13 = arith.constant 0 : index
      %13 = vector.load %arg4[%c0_12, %c0_13] : memref<1x32xf32, #tpu.memory_space<vmem>>, vector<1x32xf32>
      %c0_14 = arith.constant 0 : index
      %c0_15 = arith.constant 0 : index
      %14 = vector.load %arg5[%c0_14, %c0_15] : memref<1x32xf32, #tpu.memory_space<vmem>>, vector<1x32xf32>
      %c0_16 = arith.constant 0 : index
      %c0_17 = arith.constant 0 : index
      %15 = vector.load %arg6[%c0_16, %c0_17] : memref<1x32xf32, #tpu.memory_space<vmem>>, vector<1x32xf32>
      %c0_18 = arith.constant 0 : index
      %c0_19 = arith.constant 0 : index
      %16 = vector.load %arg10[%c0_18, %c0_19] : memref<32x32xf32, #tpu.memory_space<vmem>>, vector<32x32xf32>
      %17 = tpu.transpose %12, [1, 0] : vector<1x32xf32> -> vector<32x1xf32>
      %18 = vector.broadcast %17 : vector<32x1xf32> to vector<32x32xf32>
      %19 = vector.broadcast %14 : vector<1x32xf32> to vector<32x32xf32>
      %20 = arith.mulf %18, %19 : vector<32x32xf32>
      %21 = arith.subf %16, %20 : vector<32x32xf32>
      %22 = tpu.transpose %13, [1, 0] : vector<1x32xf32> -> vector<32x1xf32>
      %23 = vector.broadcast %22 : vector<32x1xf32> to vector<32x32xf32>
      %24 = arith.mulf %21, %23 : vector<32x32xf32>
      %25 = vector.broadcast %15 : vector<1x32xf32> to vector<32x32xf32>
      %26 = arith.mulf %24, %25 : vector<32x32xf32>
      %27 = arith.mulf %26, %26 : vector<32x32xf32>
      %28 = vector.shape_cast %27 : vector<32x32xf32> to vector<1x32x32xf32>
      %cst_20 = arith.constant dense<0.000000e+00> : vector<1xf32>
      %29 = vector.multi_reduction <add>, %28, %cst_20 [1, 2] : vector<1x32x32xf32> to vector<1xf32>
      %30 = vector.shape_cast %29 : vector<1xf32> to vector<1x1x1xf32>
      %31 = vector.extract %30[0, 0, 0] : f32 from vector<1x1x1xf32>
      %cst_21 = arith.constant 5.000000e-02 : f32
      %32 = arith.mulf %cst_21, %31 : f32
      %33 = arith.cmpi eq, %arg0, %arg1 : i32
      %34 = arith.extui %33 : i1 to i32
      %cst_22 = arith.constant 5.000000e-02 : f32
      %c0_i32_23 = arith.constant 0 : i32
      %35 = arith.cmpi ne, %34, %c0_i32_23 : i32
      %36 = scf.if %35 -> (f32) {
        %49 = tpu.iota {dimensions = array<i32: 0>} : vector<32x32xi32>
        %50 = tpu.iota {dimensions = array<i32: 1>} : vector<32x32xi32>
        %51 = arith.cmpi eq, %49, %50 : vector<32x32xi32>
        %cst_30 = arith.constant 1.000000e+00 : f32
        %52 = arith.subf %cst_30, %cst_22 : f32
        %53 = vector.broadcast %52 : f32 to vector<32x32xf32>
        %54 = arith.mulf %53, %26 : vector<32x32xf32>
        %55 = arith.mulf %54, %26 : vector<32x32xf32>
        %cst_31 = arith.constant 2.000000e+00 : f32
        %56 = vector.broadcast %cst_31 : f32 to vector<32x32xf32>
        %57 = arith.mulf %56, %26 : vector<32x32xf32>
        %58 = arith.subf %55, %57 : vector<32x32xf32>
        %cst_32 = arith.constant 1.000000e+00 : f32
        %59 = vector.broadcast %cst_32 : f32 to vector<32x32xf32>
        %60 = arith.addf %58, %59 : vector<32x32xf32>
        %cst_33 = arith.constant 0.000000e+00 : f32
        %61 = vector.broadcast %cst_33 : f32 to vector<32x32xf32>
        %62 = arith.select %51, %60, %61 : vector<32x32xi1>, vector<32x32xf32>
        %63 = vector.shape_cast %62 : vector<32x32xf32> to vector<1x32x32xf32>
        %cst_34 = arith.constant dense<0.000000e+00> : vector<1xf32>
        %64 = vector.multi_reduction <add>, %63, %cst_34 [1, 2] : vector<1x32x32xf32> to vector<1xf32>
        %65 = vector.shape_cast %64 : vector<1xf32> to vector<1x1x1xf32>
        %66 = vector.extract %65[0, 0, 0] : f32 from vector<1x1x1xf32>
        %67 = arith.addf %32, %66 : f32
        scf.yield %67 : f32
      } else {
        scf.yield %32 : f32
      }
      %cst_24 = arith.constant 2.500000e-02 : f32
      %37 = arith.mulf %cst_24, %36 : f32
      %38 = tpu.iota {dimensions = array<i32: 0>} : vector<8x128xi32>
      %39 = tpu.iota {dimensions = array<i32: 1>} : vector<8x128xi32>
      %c0_i32_25 = arith.constant 0 : i32
      %40 = vector.broadcast %c0_i32_25 : i32 to vector<8x128xi32>
      %41 = arith.cmpi eq, %38, %40 : vector<8x128xi32>
      %c0_i32_26 = arith.constant 0 : i32
      %42 = vector.broadcast %c0_i32_26 : i32 to vector<8x128xi32>
      %43 = arith.cmpi eq, %39, %42 : vector<8x128xi32>
      %44 = arith.andi %41, %43 : vector<8x128xi1>
      %cst_27 = arith.constant 0.000000e+00 : f32
      %45 = vector.broadcast %37 : f32 to vector<8x128xf32>
      %46 = vector.broadcast %cst_27 : f32 to vector<8x128xf32>
      %47 = arith.select %44, %45, %46 : vector<8x128xi1>, vector<8x128xf32>
      %c0_28 = arith.constant 0 : index
      %c0_29 = arith.constant 0 : index
      %48 = vector.load %arg9[%c0_28, %c0_29] : memref<8x128xf32, #tpu.memory_space<vmem>>, vector<8x128xf32>
      tpu.vector_store %arg9[%c0_28, %c0_29], %47 {strides = array<i32>} : memref<8x128xf32, #tpu.memory_space<vmem>>, vector<8x128xf32>,
    } else {
    }
    return
  }
  func.func @transform_0(%arg0: i32, %arg1: i32, %arg2: i32) -> (i32, i32) {
    %c0_i32 = arith.constant 0 : i32
    %c0_i32_0 = arith.constant 0 : i32
    return %c0_i32, %arg0 : i32, i32
  }
  func.func @transform_1(%arg0: i32, %arg1: i32, %arg2: i32) -> (i32, i32) {
    %c0_i32 = arith.constant 0 : i32
    %c0_i32_0 = arith.constant 0 : i32
    return %c0_i32, %arg0 : i32, i32
  }
  func.func @transform_2(%arg0: i32, %arg1: i32, %arg2: i32) -> (i32, i32) {
    %c0_i32 = arith.constant 0 : i32
    %c0_i32_0 = arith.constant 0 : i32
    return %c0_i32, %arg1 : i32, i32
  }
  func.func @transform_3(%arg0: i32, %arg1: i32, %arg2: i32) -> (i32, i32) {
    %c0_i32 = arith.constant 0 : i32
    %c0_i32_0 = arith.constant 0 : i32
    return %c0_i32, %arg1 : i32, i32
  }
  func.func @transform_4(%arg0: i32, %arg1: i32, %arg2: i32) -> (i32, i32) {
    %c0_i32 = arith.constant 0 : i32
    return %arg2, %arg0 : i32, i32
  }
  func.func @transform_5(%arg0: i32, %arg1: i32, %arg2: i32) -> (i32, i32) {
    %c0_i32 = arith.constant 0 : i32
    return %arg2, %arg1 : i32, i32
  }
  func.func @transform_6(%arg0: i32, %arg1: i32, %arg2: i32) -> (i32, i32) {
    %c0_i32 = arith.constant 0 : i32
    return %arg0, %arg1 : i32, i32
  }
}

</mosaic_0001>

<llo_original>
// kernel: tpu_custom_call.1
$region0: #{tpu_custom_call.1}
  #allocation0 [shape = 'u32[]', space=smem, size = 0x4, offset = 0x4, fixed_abs, tag = 'smem constant byte address 0x4 - core index']
  #allocation1 [shape = 'u32[72,128]{1,0:T(1,128)}', space=vmem, size = 0x9000, scoped, tag = 'internal scratch']
  #allocation2 [shape = 'f32[32,32]{1,0:T(8,128)}', space=vmem, size = 0x4000, scoped, tag = 'scratch operand']
  %s0 = inlined_call_operand.hbm [shape: f32[1,32], index: 0, kind: input, shape index: {}]
  %s1 = inlined_call_operand.hbm [shape: f32[1,32], index: 1, kind: input, shape index: {}]
  %s2 = inlined_call_operand.vmem [shape: f32[1,32], index: 2, kind: input, shape index: {}]
  %s3 = inlined_call_operand.vmem [shape: f32[1,32], index: 3, kind: input, shape index: {}]
  %s4 = inlined_call_operand.hbm [shape: f32[8,32], index: 4, kind: input, shape index: {}]
  %s5 = inlined_call_operand.hbm [shape: f32[8,32], index: 5, kind: input, shape index: {}]
  %s6 = inlined_call_operand.hbm [shape: f32[8,128], index: 6, kind: output, shape index: {}]
  %s7 = sld [smem:[#allocation0]]
  $region66: #{tpu_custom_call.1} parent=0
    _
  %s9 = ssub.s32 1, %s7
  %s10 = scalar_select 0, %s9, %s7
  $region1: #{tpu_custom_call.1} parent=0
    #allocation3 [shape = 'u8[512]{0}', space=vmem, size = 0x400, scoped, tag = 'input window, operand 0, single buffered']
    #allocation4 [shape = 's32[1]{0}', space=sflag, size = 0x4, scoped, tag = 'scoped memory for tpu_custom_call.1']
    #allocation5 [shape = 's32[1]{0}', space=sflag, size = 0x4, scoped, tag = 'scoped memory for tpu_custom_call.1']
    #allocation6 [shape = 'u8[512]{0}', space=vmem, size = 0x400, scoped, tag = 'input window, operand 1, single buffered']
    #allocation7 [shape = 's32[1]{0}', space=sflag, size = 0x4, scoped, tag = 'scoped memory for tpu_custom_call.1']
    #allocation8 [shape = 'u8[4096]{0}', space=vmem, size = 0x1000, scoped, tag = 'input window, operand 4, single buffered']
    #allocation9 [shape = 'u8[4096]{0}', space=vmem, size = 0x1000, scoped, tag = 'input window, operand 5, single buffered']
    #allocation10 [shape = 's32[1]{0}', space=sflag, size = 0x4, scoped, tag = 'scoped memory for tpu_custom_call.1']
    #allocation11 [shape = 'u8[4096]{0}', space=vmem, size = 0x1000, scoped, tag = 'output window, operand 0, single buffered']
    %11 = vsyncpa [#allocation4], 0
    %12 = vsyncpa [#allocation7], 0
    %13 = vsyncpa [#allocation10], 0
    %14 = vsyncpa [#allocation5], 0
    // Predicated region
    $region2: #{tpu_custom_call.1} parent=1 // pred_check
      _
    $region3: #{tpu_custom_call.1} parent=1 // pred_check_branch
      %16 = sbr.rel (0) target = $region5
    $region4: #{tpu_custom_call.1} parent=1 // pred_region
      %18 = vsyncadd [#allocation4], 0
      %s20 = sshll.u32 %s0, 4
      %s21 = int_to_ptr.hbm [resolvable:$true] %s20
      %s22 = sshll.u32 [#allocation3], 4
      %s23 = int_to_ptr.vmem [resolvable:$true] %s22
      %25 = dma.hbm_to_vmem [thread:$0]  %s21, 16, %s23, [#allocation4]
    $region5: #{tpu_custom_call.1} parent=1 // pred_fallthru
      _
    // Predicated region
    $region6: #{tpu_custom_call.1} parent=1 // pred_check
      _
    $region7: #{tpu_custom_call.1} parent=1 // pred_check_branch
      %27 = sbr.rel (0) target = $region9
    $region8: #{tpu_custom_call.1} parent=1 // pred_region
      %29 = vsyncadd [#allocation7], 0
      %s31 = sshll.u32 %s1, 4
      %s32 = int_to_ptr.hbm [resolvable:$true] %s31
      %s33 = sshll.u32 [#allocation6], 4
      %s34 = int_to_ptr.vmem [resolvable:$true] %s33
      %36 = dma.hbm_to_vmem [thread:$0]  %s32, 16, %s34, [#allocation7]
    $region9: #{tpu_custom_call.1} parent=1 // pred_fallthru
      _
    // Predicated region
    $region10: #{tpu_custom_call.1} parent=1 // pred_check
      _
    $region11: #{tpu_custom_call.1} parent=1 // pred_check_branch
      %38 = sbr.rel (0) target = $region13
    $region12: #{tpu_custom_call.1} parent=1 // pred_region
      _
    $region13: #{tpu_custom_call.1} parent=1 // pred_fallthru
      _
    // Predicated region
    $region14: #{tpu_custom_call.1} parent=1 // pred_check
      _
    $region15: #{tpu_custom_call.1} parent=1 // pred_check_branch
      %40 = sbr.rel (0) target = $region17
    $region16: #{tpu_custom_call.1} parent=1 // pred_region
      _
    $region17: #{tpu_custom_call.1} parent=1 // pred_fallthru
      _
    // Predicated region
    $region18: #{tpu_custom_call.1} parent=1 // pred_check
      _
    $region19: #{tpu_custom_call.1} parent=1 // pred_check_branch
      %42 = sbr.rel (0) target = $region21
    $region20: #{tpu_custom_call.1} parent=1 // pred_region
      %44 = vsyncadd [#allocation7], 0
      %s46 = sshll.u32 %s4, 4
      %s47 = int_to_ptr.hbm [resolvable:$true] %s46
      %s48 = sshll.u32 [#allocation8], 4
      %s49 = int_to_ptr.vmem [resolvable:$true] %s48
      %51 = dma.hbm_to_vmem [thread:$0]  %s47, 128, %s49, [#allocation7]
    $region21: #{tpu_custom_call.1} parent=1 // pred_fallthru
      _
    // Predicated region
    $region22: #{tpu_custom_call.1} parent=1 // pred_check
      _
    $region23: #{tpu_custom_call.1} parent=1 // pred_check_branch
      %53 = sbr.rel (0) target = $region25
    $region24: #{tpu_custom_call.1} parent=1 // pred_region
      %55 = vsyncadd [#allocation10], 0
      %s57 = sshll.u32 %s5, 4
      %s58 = int_to_ptr.hbm [resolvable:$true] %s57
      %s59 = sshll.u32 [#allocation9], 4
      %s60 = int_to_ptr.vmem [resolvable:$true] %s59
      %62 = dma.hbm_to_vmem [thread:$0]  %s58, 128, %s60, [#allocation10]
    $region25: #{tpu_custom_call.1} parent=1 // pred_fallthru
      _
    // Predicated region
    $region26: #{tpu_custom_call.1} parent=1 // pred_check
      _
    $region27: #{tpu_custom_call.1} parent=1 // pred_check_branch
      %64 = sbr.rel (0) target = $region29
    $region28: #{tpu_custom_call.1} parent=1 // pred_region
      %66 = dma.done [#allocation4], 16
    $region29: #{tpu_custom_call.1} parent=1 // pred_fallthru
      _
    // Predicated region
    $region30: #{tpu_custom_call.1} parent=1 // pred_check
      _
    $region31: #{tpu_custom_call.1} parent=1 // pred_check_branch
      %68 = sbr.rel (0) target = $region33
    $region32: #{tpu_custom_call.1} parent=1 // pred_region
      %70 = dma.done [#allocation7], 16
    $region33: #{tpu_custom_call.1} parent=1 // pred_fallthru
      _
    // Predicated region
    $region34: #{tpu_custom_call.1} parent=1 // pred_check
      _
    $region35: #{tpu_custom_call.1} parent=1 // pred_check_branch
      %72 = sbr.rel (0) target = $region37
    $region36: #{tpu_custom_call.1} parent=1 // pred_region
      %74 = dma.done [#allocation7], 128
    $region37: #{tpu_custom_call.1} parent=1 // pred_fallthru
      _
    // Predicated region
    $region38: #{tpu_custom_call.1} parent=1 // pred_check
      _
    $region39: #{tpu_custom_call.1} parent=1 // pred_check_branch
      %76 = sbr.rel (0) target = $region41
    $region40: #{tpu_custom_call.1} parent=1 // pred_region
      %78 = dma.done [#allocation10], 128
    $region41: #{tpu_custom_call.1} parent=1 // pred_fallthru
      _
    %p79 = scmp.eq.s32.totalorder 0, 0
    // Predicated region
    $region42: #{tpu_custom_call.1} parent=1 // pred_check
      %p80 = pneg %p79
    $region43: #{tpu_custom_call.1} parent=1 // pred_check_branch
      %82 = sbr.rel (%p80) target = $region45
    $region44: #{tpu_custom_call.1} parent=1 // pred_region
      %vm83 = vcmask 261120
      %84 = vst.msk [vmem:[#allocation2] sm:$0xff] %vm83, 0.0
      %85 = vst.msk [vmem:[#allocation2 + $0x8] sm:$0xff] %vm83, 0.0
      %86 = vst.msk [vmem:[#allocation2 + $0x10] sm:$0xff] %vm83, 0.0
      %87 = vst.msk [vmem:[#allocation2 + $0x18] sm:$0xff] %vm83, 0.0
    $region45: #{tpu_custom_call.1} parent=1 // pred_fallthru
      _
    %v88 = vld [vmem:[#allocation2] sm:$0xff]
    %v89 = vld [vmem:[#allocation2 + $0x8] sm:$0xff]
    %v90 = vld [vmem:[#allocation2 + $0x10] sm:$0xff]
    %v91 = vld [vmem:[#allocation2 + $0x18] sm:$0xff]
    %v92 = vld [vmem:[#allocation8] sm:$0xff]
    %v93 = vld [vmem:[#allocation9] sm:$0xff]
    %94 = vxpose.xlu0.b32.start [1/16] %v92, 128
    %95 = vxpose.xlu0.b32.cont [2/16] 0.0, 128
    %96 = vxpose.xlu0.b32.cont [3/16] 0.0, 128
    %97 = vxpose.xlu0.b32.cont [4/16] 0.0, 128
    %98 = vxpose.xlu0.b32.cont [5/16] 0.0, 128
    %99 = vxpose.xlu0.b32.cont [6/16] 0.0, 128
    %100 = vxpose.xlu0.b32.cont [7/16] 0.0, 128
    %101 = vxpose.xlu0.b32.cont [8/16] 0.0, 128
    %102 = vxpose.xlu0.b32.cont [9/16] 0.0, 128
    %103 = vxpose.xlu0.b32.cont [10/16] 0.0, 128
    %104 = vxpose.xlu0.b32.cont [11/16] 0.0, 128
    %105 = vxpose.xlu0.b32.cont [12/16] 0.0, 128
    %106 = vxpose.xlu0.b32.cont [13/16] 0.0, 128
    %107 = vxpose.xlu0.b32.cont [14/16] 0.0, 128
    %108 = vxpose.xlu0.b32.cont [15/16] 0.0, 128
    %109 = vxpose.xlu0.b32.end [16/16] 0.0, 128
    %v110 = vpop.trf.xlu0
    %v111 = vpop.trf.xlu0
    %v112 = vpop.trf.xlu0
    %v113 = vpop.trf.xlu0
    %v114 = vpop.trf.xlu0
    %v115 = vpop.trf.xlu0
    %v116 = vpop.trf.xlu0
    %v117 = vpop.trf.xlu0
    %v118 = vpop.trf.xlu0
    %v119 = vpop.trf.xlu0
    %v120 = vpop.trf.xlu0
    %v121 = vpop.trf.xlu0
    %v122 = vpop.trf.xlu0
    %v123 = vpop.trf.xlu0
    %v124 = vpop.trf.xlu0
    %v125 = vpop.trf.xlu0
    %vm126 = vcmask 64512
    %v128 = vsel %vm126, %v110, 0
    %v131 = vsel %vm126, %v111, 0
    %v134 = vsel %vm126, %v112, 0
    %v137 = vsel %vm126, %v113, 0
    %139 = vmatpush.msra.mxu0 0.0
    %140 = vmatpush.msra.mxu0 0.0
    %141 = vmatpush.msra.mxu0 0.0
    %142 = vmatpush.msra.mxu0 0.0
    %143 = vmatpush.msra.mxu0 0.0
    %144 = vmatpush.msra.mxu0 0.0
    %145 = vmatpush.msra.mxu0 0.0
    %146 = vmatpush.msra.mxu0 0.0
    %147 = vmatpush.msra.mxu0 0.0
    %148 = vmatpush.msra.mxu0 0.0
    %149 = vmatpush.msra.mxu0 0.0
    %150 = vmatpush.msra.mxu0 0.0
    %151 = vmatpush.msra.mxu0 0.0
    %152 = vmatpush.msra.mxu0 0.0
    %153 = vmatpush.msra.mxu0 0.0
    %154 = vmatpush.msra.mxu0 %v93
    %155 = vmatmul.f32.gmra.mxu0 %v128
    %v156 = vpop.f32.mrf.mxu0
    %v157 = vadd.f32 0.0, %v156
    %158 = vmatmul.f32.gmra.mxu0 %v131
    %v159 = vpop.f32.mrf.mxu0
    %v160 = vadd.f32 0.0, %v159
    %161 = vmatmul.f32.gmra.mxu0 %v134
    %v162 = vpop.f32.mrf.mxu0
    %v163 = vadd.f32 0.0, %v162
    %164 = vmatmul.f32.gmra.mxu0 %v137
    %v165 = vpop.f32.mrf.mxu0
    %v166 = vadd.f32 0.0, %v165
    %167 = vdwg.mxu0
    %v168 = vadd.f32 %v88, %v157
    %v169 = vadd.f32 %v89, %v160
    %v170 = vadd.f32 %v90, %v163
    %v171 = vadd.f32 %v91, %v166
    %vm172 = vcmask 261120
    %173 = vst.msk [vmem:[#allocation2] sm:$0xff] %vm172, %v168
    %174 = vst.msk [vmem:[#allocation2 + $0x8] sm:$0xff] %vm172, %v169
    %175 = vst.msk [vmem:[#allocation2 + $0x10] sm:$0xff] %vm172, %v170
    %176 = vst.msk [vmem:[#allocation2 + $0x18] sm:$0xff] %vm172, %v171
    // Predicated region
    $region46: #{tpu_custom_call.1} parent=1 // pred_check
      %p177 = pneg %p79
    $region47: #{tpu_custom_call.1} parent=1 // pred_check_branch
      %179 = sbr.rel (%p177) target = $region49
    $region48: #{tpu_custom_call.1} parent=1 // pred_region
      %v180 = vld [vmem:[#allocation3] sm:$0x1]
      %v181 = vld [vmem:[#allocation6] sm:$0x1]
      %v182 = vld [vmem:[%s2] sm:$0x1]
      %v183 = vld [vmem:[%s3] sm:$0x1]
      %v184 = vld [vmem:[#allocation2] sm:$0xff]
      %v185 = vld [vmem:[#allocation2 + $0x8] sm:$0xff]
      %v186 = vld [vmem:[#allocation2 + $0x10] sm:$0xff]
      %v187 = vld [vmem:[#allocation2 + $0x18] sm:$0xff]
      %188 = vxpose.xlu0.b32.start [1/16] %v180, 128
      %189 = vxpose.xlu0.b32.cont [2/16] 0.0, 128
      %190 = vxpose.xlu0.b32.cont [3/16] 0.0, 128
      %191 = vxpose.xlu0.b32.cont [4/16] 0.0, 128
      %192 = vxpose.xlu0.b32.cont [5/16] 0.0, 128
      %193 = vxpose.xlu0.b32.cont [6/16] 0.0, 128
      %194 = vxpose.xlu0.b32.cont [7/16] 0.0, 128
      %195 = vxpose.xlu0.b32.cont [8/16] 0.0, 128
      %196 = vxpose.xlu0.b32.cont [9/16] 0.0, 128
      %197 = vxpose.xlu0.b32.cont [10/16] 0.0, 128
      %198 = vxpose.xlu0.b32.cont [11/16] 0.0, 128
      %199 = vxpose.xlu0.b32.cont [12/16] 0.0, 128
      %200 = vxpose.xlu0.b32.cont [13/16] 0.0, 128
      %201 = vxpose.xlu0.b32.cont [14/16] 0.0, 128
      %202 = vxpose.xlu0.b32.cont [15/16] 0.0, 128
      %203 = vxpose.xlu0.b32.end [16/16] 0.0, 128
      %v204 = vpop.trf.xlu0
      %v205 = vpop.trf.xlu0
      %v206 = vpop.trf.xlu0
      %v207 = vpop.trf.xlu0
      %v208 = vpop.trf.xlu0
      %v209 = vpop.trf.xlu0
      %v210 = vpop.trf.xlu0
      %v211 = vpop.trf.xlu0
      %v212 = vpop.trf.xlu0
      %v213 = vpop.trf.xlu0
      %v214 = vpop.trf.xlu0
      %v215 = vpop.trf.xlu0
      %v216 = vpop.trf.xlu0
      %v217 = vpop.trf.xlu0
      %v218 = vpop.trf.xlu0
      %v219 = vpop.trf.xlu0
      %221 = vset.pattern.permute.xlu0 0
      %222 = vperm.xlu0 %221, %v204
      %v223 = vpop.permute.xlu0 %222
      %226 = vset.pattern.permute.xlu0 0
      %227 = vperm.xlu0 %226, %v205
      %v228 = vpop.permute.xlu0 %227
      %231 = vset.pattern.permute.xlu0 0
      %232 = vperm.xlu0 %231, %v206
      %v233 = vpop.permute.xlu0 %232
      %236 = vset.pattern.permute.xlu0 0
      %237 = vperm.xlu0 %236, %v207
      %v238 = vpop.permute.xlu0 %237
      %v241 = vperm.slane %v182, 0
      %v243 = vmul.f32 %v223, %v241
      %v244 = vmul.f32 %v228, %v241
      %v245 = vmul.f32 %v233, %v241
      %v246 = vmul.f32 %v238, %v241
      %v247 = vsub.f32 %v184, %v243
      %v248 = vsub.f32 %v185, %v244
      %v249 = vsub.f32 %v186, %v245
      %v250 = vsub.f32 %v187, %v246
      %251 = vxpose.xlu0.b32.start [1/16] %v181, 128
      %252 = vxpose.xlu0.b32.cont [2/16] 0.0, 128
      %253 = vxpose.xlu0.b32.cont [3/16] 0.0, 128
      %254 = vxpose.xlu0.b32.cont [4/16] 0.0, 128
      %255 = vxpose.xlu0.b32.cont [5/16] 0.0, 128
      %256 = vxpose.xlu0.b32.cont [6/16] 0.0, 128
      %257 = vxpose.xlu0.b32.cont [7/16] 0.0, 128
      %258 = vxpose.xlu0.b32.cont [8/16] 0.0, 128
      %259 = vxpose.xlu0.b32.cont [9/16] 0.0, 128
      %260 = vxpose.xlu0.b32.cont [10/16] 0.0, 128
      %261 = vxpose.xlu0.b32.cont [11/16] 0.0, 128
      %262 = vxpose.xlu0.b32.cont [12/16] 0.0, 128
      %263 = vxpose.xlu0.b32.cont [13/16] 0.0, 128
      %264 = vxpose.xlu0.b32.cont [14/16] 0.0, 128
      %265 = vxpose.xlu0.b32.cont [15/16] 0.0, 128
      %266 = vxpose.xlu0.b32.end [16/16] 0.0, 128
      %v267 = vpop.trf.xlu0
      %v268 = vpop.trf.xlu0
      %v269 = vpop.trf.xlu0
      %v270 = vpop.trf.xlu0
      %v271 = vpop.trf.xlu0
      %v272 = vpop.trf.xlu0
      %v273 = vpop.trf.xlu0
      %v274 = vpop.trf.xlu0
      %v275 = vpop.trf.xlu0
      %v276 = vpop.trf.xlu0
      %v277 = vpop.trf.xlu0
      %v278 = vpop.trf.xlu0
      %v279 = vpop.trf.xlu0
      %v280 = vpop.trf.xlu0
      %v281 = vpop.trf.xlu0
      %v282 = vpop.trf.xlu0
      %284 = vset.pattern.permute.xlu0 0
      %285 = vperm.xlu0 %284, %v267
      %v286 = vpop.permute.xlu0 %285
      %289 = vset.pattern.permute.xlu0 0
      %290 = vperm.xlu0 %289, %v268
      %v291 = vpop.permute.xlu0 %290
      %294 = vset.pattern.permute.xlu0 0
      %295 = vperm.xlu0 %294, %v269
      %v296 = vpop.permute.xlu0 %295
      %299 = vset.pattern.permute.xlu0 0
      %300 = vperm.xlu0 %299, %v270
      %v301 = vpop.permute.xlu0 %300
      %v303 = vmul.f32 %v247, %v286
      %v304 = vmul.f32 %v248, %v291
      %v305 = vmul.f32 %v249, %v296
      %v306 = vmul.f32 %v250, %v301
      %v308 = vperm.slane %v183, 0
      %v310 = vmul.f32 %v303, %v308
      %v311 = vmul.f32 %v304, %v308
      %v312 = vmul.f32 %v305, %v308
      %v313 = vmul.f32 %v306, %v308
      %v314 = vmul.f32 %v310, %v310
      %v315 = vmul.f32 %v311, %v311
      %v316 = vmul.f32 %v312, %v312
      %v317 = vmul.f32 %v313, %v313
      %v318 = vsel %vm172, %v314, 0.0
      %v319 = vsel %vm172, %v315, 0.0
      %v320 = vadd.f32 %v318, %v319
      %v321 = vsel %vm172, %v316, 0.0
      %v322 = vadd.f32 %v320, %v321
      %v323 = vsel %vm172, %v317, 0.0
      %v324 = vadd.f32 %v322, %v323
      %325 = vadd.xlane.f32.xlu0 %v324
      %v326 = vpop.xlane.xlu0 %325
      %v327 = vrot.slane %v326, 4
      %v328 = vadd.f32 %v326, %v327
      %v329 = vrot.slane %v328, 2
      %v330 = vadd.f32 %v328, %v329
      %v331 = vrot.slane %v330, 1
      %v332 = vadd.f32 %v330, %v331
      %s333 = vtos %v332
      %s334 = smul.f32 %s333, 0.05
      %p335 = scmp.eq.s32.totalorder 0, 0
      // Predicated region
      $region50: #{tpu_custom_call.1} parent=48 // pred_check
        %p336 = pneg %p335
      $region51: #{tpu_custom_call.1} parent=48 // pred_check_branch
        %338 = sbr.rel (%p336) target = $region53
      $region52: #{tpu_custom_call.1} parent=48 // pred_region
        %v339 = vlaneseq
        %v340 = vshrl.u32 %v339, 7
        %v341 = vadd.s32 %v340, 8
        %v342 = vadd.s32 %v340, 16
        %v343 = vadd.s32 %v340, 24
        %v344 = vlaneseq
        %v345 = vand.u32 %v344, 127
        %vm346 = vcmp.eq.s32.totalorder %v340, %v345
        %vm347 = vcmp.eq.s32.totalorder %v341, %v345
        %vm348 = vcmp.eq.s32.totalorder %v342, %v345
        %vm349 = vcmp.eq.s32.totalorder %v343, %v345
        %v350 = vmul.f32 %v310, 0.95
        %v351 = vmul.f32 %v311, 0.95
        %v352 = vmul.f32 %v312, 0.95
        %v353 = vmul.f32 %v313, 0.95
        %v354 = vmul.f32 %v350, %v310
        %v355 = vmul.f32 %v351, %v311
        %v356 = vmul.f32 %v352, %v312
        %v357 = vmul.f32 %v353, %v313
        %v358 = vmul.f32 %v310, 2.0
        %v359 = vmul.f32 %v311, 2.0
        %v360 = vmul.f32 %v312, 2.0
        %v361 = vmul.f32 %v313, 2.0
        %v362 = vsub.f32 %v354, %v358
        %v363 = vsub.f32 %v355, %v359
        %v364 = vsub.f32 %v356, %v360
        %v365 = vsub.f32 %v357, %v361
        %v366 = vadd.f32 %v362, 1.0
        %v367 = vadd.f32 %v363, 1.0
        %v368 = vadd.f32 %v364, 1.0
        %v369 = vadd.f32 %v365, 1.0
        %v370 = vsel %vm346, %v366, 0.0
        %v371 = vsel %vm347, %v367, 0.0
        %v372 = vsel %vm348, %v368, 0.0
        %v373 = vsel %vm349, %v369, 0.0
        %v374 = vsel %vm172, %v370, 0.0
        %v375 = vsel %vm172, %v371, 0.0
        %v376 = vadd.f32 %v374, %v375
        %v377 = vsel %vm172, %v372, 0.0
        %v378 = vadd.f32 %v376, %v377
        %v379 = vsel %vm172, %v373, 0.0
        %v380 = vadd.f32 %v378, %v379
        %381 = vadd.xlane.f32.xlu0 %v380
        %v382 = vpop.xlane.xlu0 %381
        %v383 = vrot.slane %v382, 4
        %v384 = vadd.f32 %v382, %v383
        %v385 = vrot.slane %v384, 2
        %v386 = vadd.f32 %v384, %v385
        %v387 = vrot.slane %v386, 1
        %v388 = vadd.f32 %v386, %v387
        %s389 = vtos %v388
        %s390 = sadd.f32 %s334, %s389
      $region53: #{tpu_custom_call.1} parent=48 // pred_fallthru
        %s391 = sphi 0, %s390
      %p392 = pneg %p335
      // Predicated region
      $region54: #{tpu_custom_call.1} parent=48 // pred_check
        _
      $region55: #{tpu_custom_call.1} parent=48 // pred_check_branch
        %394 = sbr.rel (%p335) target = $region57
      $region56: #{tpu_custom_call.1} parent=48 // pred_region
        _
      $region57: #{tpu_custom_call.1} parent=48 // pred_fallthru
        %s395 = sphi %s391, %s334
      %s396 = smul.f32 %s395, 0.025
      %v397 = vlaneseq
      %v398 = vshrl.u32 %v397, 7
      %v399 = vlaneseq
      %v400 = vand.u32 %v399, 127
      %vm401 = vcmp.eq.s32.totalorder %v398, 0
      %vm402 = vcmp.eq.s32.totalorder %v400, 0
      %vm403 = vmand %vm401, %vm402
      %v404 = vstv %s396
      %v405 = vsel %vm403, %v404, 0.0
      %406 = vst [vmem:[#allocation11] sm:$0xff] %v405
    $region49: #{tpu_custom_call.1} parent=1 // pred_fallthru
      _
    // Predicated region
    $region58: #{tpu_custom_call.1} parent=1 // pred_check
      _
    $region59: #{tpu_custom_call.1} parent=1 // pred_check_branch
      %408 = sbr.rel (0) target = $region61
    $region60: #{tpu_custom_call.1} parent=1 // pred_region
      %410 = vsyncadd [#allocation5], 0
      %s412 = sshll.u32 [#allocation11], 4
      %s413 = int_to_ptr.vmem [resolvable:$true] %s412
      %s414 = sshll.u32 %s6, 4
      %s415 = int_to_ptr.hbm [resolvable:$true] %s414
      %417 = dma.vmem_to_hbm [thread:$0]  %s413, 128, %s415, [#allocation5]
    $region61: #{tpu_custom_call.1} parent=1 // pred_fallthru
      _
    // Predicated region
    $region62: #{tpu_custom_call.1} parent=1 // pred_check
      _
    $region63: #{tpu_custom_call.1} parent=1 // pred_check_branch
      %419 = sbr.rel (0) target = $region65
    $region64: #{tpu_custom_call.1} parent=1 // pred_region
      %421 = dma.done [#allocation5], 128
    $region65: #{tpu_custom_call.1} parent=1 // pred_fallthru
      _
    %422 = vsyncpa [#allocation4], 1
    %423 = vsyncpa [#allocation7], 1
    %424 = vsyncpa [#allocation10], 1
    %425 = vsyncpa [#allocation5], 1

</llo_original>
